<compile_context>
chip_gen: v5e
topology: v5e:2x2
jax: 0.10.0
libtpu: 0.0.40
codegen_flags: <defaults>
</compile_context>

<pallas_src>
import functools
import math

import numpy as np

import jax
import jax.numpy as jnp
from jax import lax
from jax.experimental import pallas as pl
from jax.experimental.pallas import tpu as pltpu


# pywt.Wavelet('haar').dec_lo / dec_hi, inlined so no external deps are needed.
_HAAR_DEC_LO = [0.7071067811865476, 0.7071067811865476]
_HAAR_DEC_HI = [-0.7071067811865476, 0.7071067811865476]

# Use the fused (kron) single-matmul form while K = (H2*W2, H*W) stays small
# (covers planes up to ~48x48); larger planes use the separable kernel.
_KRON_MAX_BYTES = 8 << 20


def _round_down(x, m):
    return (x // m) * m


def _build_low_matrices_np(H, W):
    """Mirrors IDWT_2D_tiny.get_matrix() for the two low-pass matrices.

    Returns numpy float32:
      matrix_low_0 : (H/2, H)
      matrix_low_1 : (W, W/2)
    """
    band_low = list(_HAAR_DEC_LO)
    band_low.reverse()
    band_high = list(_HAAR_DEC_HI)
    band_high.reverse()
    assert len(band_low) == len(band_high)
    band_length = len(band_low)
    assert band_length % 2 == 0
    band_length_half = math.floor(band_length / 2)

    L1 = max(H, W)
    L = math.floor(L1 / 2)
    matrix_h = np.zeros((L, L1 + band_length - 2), dtype=np.float64)
    end = None if band_length_half == 1 else (-band_length_half + 1)

    index = 0
    for i in range(L):
        for j in range(band_length):
            matrix_h[i, index + j] = band_low[j]
        index += 2

    matrix_h_0 = matrix_h[0:math.floor(H / 2), 0:H + band_length - 2]
    matrix_h_1 = matrix_h[0:math.floor(W / 2), 0:W + band_length - 2]
    matrix_h_0 = matrix_h_0[:, band_length_half - 1:end]
    matrix_h_1 = matrix_h_1[:, band_length_half - 1:end]
    matrix_h_1 = np.transpose(matrix_h_1)

    return matrix_h_0.astype(np.float32), matrix_h_1.astype(np.float32)


@functools.lru_cache(maxsize=None)
def _kron_matrix_np(H, W, g):
    """K_g = kron(I_g, kron(m0, m1.T)) : (g*H2*W2, g*H*W), numpy float32.

    K[i*W2 + j, h*W + w] = m0[i, h] * m1[w, j]; the block-diagonal repeat
    packs g independent planes per matmul row.
    (Cache numpy, not device arrays, to avoid pinning constants to a device.)
    """
    m0, m1 = _build_low_matrices_np(H, W)          # (H/2, H), (W, W/2)
    K = np.kron(m0, np.transpose(m1)).astype(np.float32)
    if g > 1:
        K = np.kron(np.eye(g, dtype=np.float32), K)
    return K


@functools.lru_cache(maxsize=None)
def _low_matrices_t_np(H, W):
    m0, m1 = _build_low_matrices_np(H, W)
    # matrix_low_0.t() : (H, H/2),  matrix_low_1.t() : (W/2, W)
    return np.ascontiguousarray(m0.T), np.ascontiguousarray(m1.T)


def _vmem_capacity_bytes():
    try:
        return int(pltpu.get_tpu_info().vmem_capacity_bytes)
    except Exception:
        return 64 << 20   # conservative default (v7x per-core VMEM)


# ---------------------------------------------------------------------------
# Kernels
# ---------------------------------------------------------------------------
def _idwt_kron_kernel(ll_ref, k_ref, out_ref):
    # ll_ref : (B, g*H2*W2),  k_ref : (g*H2*W2, g*H*W),  out_ref : (B, g*H*W)
    out_ref[...] = jnp.dot(
        ll_ref[...], k_ref[...],
        preferred_element_type=jnp.float32).astype(out_ref.dtype)


def _idwt_sep_kernel(ll_ref, m0t_ref, m1t_ref, out_ref):
    # Fallback for large planes: separable form, batched over B planes.
    # ll_ref : (B, H2, W2), m0t_ref : (H, H2), m1t_ref : (W2, W), out: (B, H, W)
    B, H2, W2 = ll_ref.shape
    H = m0t_ref.shape[0]
    W = m1t_ref.shape[1]
    # Column transform: one large lane-trailing matmul (B*H2, W2) @ (W2, W).
    L = jnp.dot(ll_ref[...].reshape(B * H2, W2), m1t_ref[...],
                preferred_element_type=jnp.float32).reshape(B, H2, W)
    # Row transform: batched dot_general (batch dim = B) so the result is
    # produced directly in (B, H, W) layout -- avoids the implicit
    # (H, B, W) -> (B, H, W) XLU transpose of an 'hi,biw->bhw' einsum.
    m0b = jnp.broadcast_to(m0t_ref[...], (B, H, H2))
    out = lax.dot_general(
        m0b, L,
        dimension_numbers=(((2,), (1,)), ((0,), (0,))),
        preferred_element_type=jnp.float32)
    out_ref[...] = out.astype(out_ref.dtype)


# ---------------------------------------------------------------------------
# Wrapper
# ---------------------------------------------------------------------------
def idwt_2d_tiny(LL, block_planes=None, force_separable=False):
    """LL: (N, C, H/2, W/2) float32 -> reconstructed (N, C, H, W)."""
    N, C, H2, W2 = LL.shape
    H, W = 2 * H2, 2 * W2
    NC = N * C
    dtype = LL.dtype

    vmem_cap = _vmem_capacity_bytes()
    # Per-step HBM traffic target (amortizes the ~0.35us fixed grid-step cost);
    # bigger on v5e/v6e (128 MiB VMEM) than on v7x (64 MiB).
    step_bytes_target = (16 << 20) if vmem_cap >= (96 << 20) else (8 << 20)
    blocks_budget = vmem_cap // 2   # double-buffered blocks + resident consts

    base_kron_bytes = (H2 * W2) * (H * W) * 4
    use_kron = (base_kron_bytes <= _KRON_MAX_BYTES) and not force_separable

    if use_kron:
        # --- fused single-matmul path: (NR, g*H2*W2) @ (g*H2*W2, g*H*W) ----
        # Pack g planes per row so the contraction depth is >=128 and the
        # output slab is lane-dense; g is a power-of-two divisor of NC so the
        # packing reshape is free and no padding / slicing copies are needed.
        g_target = 1
        while g_target * H2 * W2 < 128:
            g_target *= 2
        g = 1
        while g < g_target and NC % (2 * g) == 0:
            g *= 2
        NR = NC // g

        # NOTE(v5e): K could be stored in bf16 (lossless for Haar) to halve
        # MXU passes / K traffic; kept f32 here for exact wavelet generality.
        K = jnp.asarray(_kron_matrix_np(H, W, g))
        k_bytes = int(K.size) * 4
        row_in = 4 * g * H2 * W2
        row_out = 4 * g * H * W

        if NR <= 8:
            B = NR                              # single full block
        else:
            b_user = max(1, block_planes // g) if block_planes else NR
            b_target = max(8, step_bytes_target // (row_in + row_out))
            b_budget = max(8, max(blocks_budget - 2 * k_bytes, 1)
                           // (2 * (row_in + row_out)))
            B = max(8, _round_down(min(b_user, b_target, b_budget), 8))
            # Keep >=2 grid steps (>=4 when enough data) so the "parallel"
            # axis shards across both v7x TensorCores and prefetch/writeback
            # actually overlaps compute.
            steps = 4 if NR >= 32 else 2
            B = min(B, max(8, _round_down(NR // steps, 8)))

        ll_flat = LL.reshape(NR, g * H2 * W2)          # free (row-major)
        grid = (pl.cdiv(NR, B),)

        vmem_limit = int(min(int(vmem_cap * 0.8),
                             max(2 * B * (row_in + row_out) + 2 * k_bytes
                                 + (8 << 20), 32 << 20)))
        cost = pl.CostEstimate(
            flops=2 * NR * (g * H2 * W2) * (g * H * W),
            transcendentals=0,
            bytes_accessed=NC * (H2 * W2 + H * W) * 4 + k_bytes)

        out_flat = pl.pallas_call(
            _idwt_kron_kernel,
            out_shape=jax.ShapeDtypeStruct((NR, g * H * W), dtype),
            grid=grid,
            in_specs=[
                pl.BlockSpec((B, g * H2 * W2), lambda i: (i, 0)),
                pl.BlockSpec((g * H2 * W2, g * H * W), lambda i: (0, 0)),
            ],
            out_specs=pl.BlockSpec((B, g * H * W), lambda i: (i, 0)),
            compiler_params=pltpu.CompilerParams(
                dimension_semantics=("parallel",),
                vmem_limit_bytes=vmem_limit),
            cost_estimate=cost,
        )(ll_flat, K)

        return out_flat.reshape(N, C, H, W)            # free (row-major)

    # --- separable fallback for large planes -------------------------------
    m0t_np, m1t_np = _low_matrices_t_np(H, W)
    m0t = jnp.asarray(m0t_np)                          # (H, H2)
    m1t = jnp.asarray(m1t_np)                          # (W2, W)
    const_bytes = 4 * (H * H2 + W2 * W)

    # Generous per-plane VMEM estimate: dbuf in/out blocks, f32 intermediates,
    # the L matmul result and the broadcast (B, H, H2) lhs.
    per_plane = 4 * (2 * H2 * W2 + 3 * H * W + 2 * H2 * W + H * H2)
    traffic_per_plane = 4 * (H2 * W2 + H * W)

    if NC <= 2:
        B = NC
    else:
        b_user = block_planes if block_planes else NC
        b_target = max(1, step_bytes_target // traffic_per_plane)
        b_budget = max(1, max(blocks_budget - 2 * const_bytes, 1) // per_plane)
        B = max(1, min(b_user, b_target, b_budget))
        steps = 4 if NC >= 8 else 2
        B = min(B, max(1, NC // steps))

    ll = LL.reshape(NC, H2, W2)                        # free (row-major)
    grid = (pl.cdiv(NC, B),)

    vmem_limit = int(min(int(vmem_cap * 0.8),
                         max(B * per_plane + 2 * const_bytes + (8 << 20),
                             32 << 20)))
    cost = pl.CostEstimate(
        flops=2 * NC * (H2 * W2 * W + H2 * H * W),
        transcendentals=0,
        bytes_accessed=NC * traffic_per_plane + const_bytes)

    out3 = pl.pallas_call(
        _idwt_sep_kernel,
        out_shape=jax.ShapeDtypeStruct((NC, H, W), dtype),
        grid=grid,
        in_specs=[
            pl.BlockSpec((B, H2, W2), lambda i: (i, 0, 0)),
            pl.BlockSpec((H, H2), lambda i: (0, 0)),
            pl.BlockSpec((W2, W), lambda i: (0, 0)),
        ],
        out_specs=pl.BlockSpec((B, H, W), lambda i: (i, 0, 0)),
        compiler_params=pltpu.CompilerParams(
            dimension_semantics=("parallel",),
            vmem_limit_bytes=vmem_limit),
        cost_estimate=cost,
    )(ll, m0t, m1t)

    return out3.reshape(N, C, H, W)                    # free (row-major)


if __name__ == "__main__":
    key = jax.random.PRNGKey(0)
    N, C, H2, W2 = 2, 4, 8, 8                       # LL is (N, C, H/2, W/2)
    LL = jax.random.normal(key, (N, C, H2, W2), dtype=jnp.float32)

    out = jax.block_until_ready(idwt_2d_tiny(LL))

    # Pure-JAX reference of the same math.
    H, W = 2 * H2, 2 * W2
    m0_np, m1_np = _build_low_matrices_np(H, W)     # (H/2, H), (W, W/2)
    m0t = jnp.asarray(m0_np.T)
    m1t = jnp.asarray(m1_np.T)
    ref = jnp.einsum("hi,nciw,wj->nchj", m0t, LL, m1t)

    assert out.shape == (N, C, H, W), out.shape
    assert jnp.allclose(out, ref, atol=1e-5, rtol=1e-5), "mismatch (kron path)"

    # Exercise the multi-step grid with a ragged last block (NC=21, B=8 -> 3 steps).
    N2, C2 = 3, 7
    LL2 = jax.random.normal(jax.random.PRNGKey(1), (N2, C2, H2, W2),
                            dtype=jnp.float32)
    out2 = jax.block_until_ready(idwt_2d_tiny(LL2, block_planes=8))
    ref2 = jnp.einsum("hi,nciw,wj->nchj", m0t, LL2, m1t)
    assert out2.shape == (N2, C2, H, W), out2.shape
    assert jnp.allclose(out2, ref2, atol=1e-5, rtol=1e-5), "mismatch (grid path)"

    # Exercise the separable fallback kernel (used for large planes).
    out3 = jax.block_until_ready(idwt_2d_tiny(LL, force_separable=True))
    assert jnp.allclose(out3, ref, atol=1e-5, rtol=1e-5), "mismatch (sep path)"

    print("KERNEL_OK")
</pallas_src>

<mosaic_0001>
module attributes {stable_mosaic.version = 11 : i64} {
  func.func @_idwt_kron_kernel(%arg0: i32, %arg1: memref<4x128xf32, #tpu.memory_space<vmem>>, %arg2: memref<128x512xf32, #tpu.memory_space<vmem>>, %arg3: memref<4x512xf32, #tpu.memory_space<vmem>>) attributes {dimension_semantics = [#tpu.dimension_semantics<parallel>], iteration_bounds = array<i64: 1>, scalar_prefetch = 0 : i64, scratch_operands = 0 : i64, tpu.core_type = #tpu.core_type<tc>, window_params = [{transform_indices = @transform_0, window_bounds = array<i64: 4, 128>}, {pipeline_mode = #tpu.pipeline_mode<synchronous>, transform_indices = @transform_1, window_bounds = array<i64: 128, 512>}, {transform_indices = @transform_2, window_bounds = array<i64: 4, 512>}]} {
    %c0 = arith.constant 0 : index
    %c0_0 = arith.constant 0 : index
    %0 = vector.load %arg1[%c0, %c0_0] : memref<4x128xf32, #tpu.memory_space<vmem>>, vector<4x128xf32>
    %c0_1 = arith.constant 0 : index
    %c0_2 = arith.constant 0 : index
    %1 = vector.load %arg2[%c0_1, %c0_2] : memref<128x512xf32, #tpu.memory_space<vmem>>, vector<128x512xf32>
    %cst = arith.constant dense<0.000000e+00> : vector<4x512xf32>
    %2 = tpu.matmul %0, %1, %cst {dimension_numbers = #tpu.dot_dimension_numbers<[1], [0], [0], [1], [0, 0, 1, 1], [], []>} : vector<4x128xf32>, vector<128x512xf32>, vector<4x512xf32> -> vector<4x512xf32>
    %c0_3 = arith.constant 0 : index
    %c0_4 = arith.constant 0 : index
    %3 = vector.load %arg3[%c0_3, %c0_4] : memref<4x512xf32, #tpu.memory_space<vmem>>, vector<4x512xf32>
    tpu.vector_store %arg3[%c0_3, %c0_4], %2 {strides = array<i32>} : memref<4x512xf32, #tpu.memory_space<vmem>>, vector<4x512xf32>,
    return
  }
  func.func @transform_0(%arg0: i32) -> (i32, i32) {
    %c0_i32 = arith.constant 0 : i32
    %c0_i32_0 = arith.constant 0 : i32
    return %arg0, %c0_i32 : i32, i32
  }
  func.func @transform_1(%arg0: i32) -> (i32, i32) {
    %c0_i32 = arith.constant 0 : i32
    %c0_i32_0 = arith.constant 0 : i32
    %c0_i32_1 = arith.constant 0 : i32
    return %c0_i32, %c0_i32_0 : i32, i32
  }
  func.func @transform_2(%arg0: i32) -> (i32, i32) {
    %c0_i32 = arith.constant 0 : i32
    %c0_i32_0 = arith.constant 0 : i32
    return %arg0, %c0_i32 : i32, i32
  }
}

</mosaic_0001>

<llo_original>
// kernel: tpu_custom_call.1
$region0: #{tpu_custom_call.1}
  #allocation0 [shape = 'u32[]', space=smem, size = 0x4, offset = 0x4, fixed_abs, tag = 'smem constant byte address 0x4 - core index']
  #allocation1 [shape = 'u32[72,128]{1,0:T(1,128)}', space=vmem, size = 0x9000, scoped, tag = 'internal scratch']
  %s0 = inlined_call_operand.hbm [shape: f32[4,128], index: 0, kind: input, shape index: {}]
  %s1 = inlined_call_operand.hbm [shape: f32[128,512], index: 1, kind: input, shape index: {}]
  %s2 = inlined_call_operand.hbm [shape: f32[4,512], index: 2, kind: output, shape index: {}]
  %s3 = sld [smem:[#allocation0]]
  $region26: #{tpu_custom_call.1} parent=0
    _
  %s5 = ssub.s32 1, %s3
  %s6 = scalar_select 0, %s5, %s3
  $region1: #{tpu_custom_call.1} parent=0
    #allocation2 [shape = 'u8[2048]{0}', space=vmem, size = 0x800, scoped, tag = 'input window, operand 0, single buffered']
    #allocation3 [shape = 's32[1]{0}', space=sflag, size = 0x4, scoped, tag = 'scoped memory for tpu_custom_call.1']
    #allocation4 [shape = 's32[1]{0}', space=sflag, size = 0x4, scoped, tag = 'scoped memory for tpu_custom_call.1']
    #allocation5 [shape = 'u8[262144]{0}', space=vmem, size = 0x40000, scoped, tag = 'input window, operand 1, single buffered']
    #allocation6 [shape = 's32[1]{0}', space=sflag, size = 0x4, scoped, tag = 'scoped memory for tpu_custom_call.1']
    #allocation7 [shape = 'u8[8192]{0}', space=vmem, size = 0x2000, scoped, tag = 'output window, operand 0, single buffered']
    %7 = vsyncpa [#allocation3], 0
    %8 = vsyncpa [#allocation6], 0
    %9 = vsyncpa [#allocation4], 0
    // Predicated region
    $region2: #{tpu_custom_call.1} parent=1 // pred_check
      _
    $region3: #{tpu_custom_call.1} parent=1 // pred_check_branch
      %11 = sbr.rel (0) target = $region5
    $region4: #{tpu_custom_call.1} parent=1 // pred_region
      %13 = vsyncadd [#allocation3], 0
      %s15 = sshll.u32 %s0, 4
      %s16 = int_to_ptr.hbm [resolvable:$true] %s15
      %s17 = sshll.u32 [#allocation2], 4
      %s18 = int_to_ptr.vmem [resolvable:$true] %s17
      %20 = dma.hbm_to_vmem [thread:$0]  %s16, 64, %s18, [#allocation3]
    $region5: #{tpu_custom_call.1} parent=1 // pred_fallthru
      _
    // Predicated region
    $region6: #{tpu_custom_call.1} parent=1 // pred_check
      _
    $region7: #{tpu_custom_call.1} parent=1 // pred_check_branch
      %22 = sbr.rel (0) target = $region9
    $region8: #{tpu_custom_call.1} parent=1 // pred_region
      %24 = vsyncadd [#allocation6], 0
      %s25 = sshll.u32 %s1, 4
      %s26 = int_to_ptr.hbm [resolvable:$true] %s25
      %s27 = sshll.u32 [#allocation5], 4
      %s28 = int_to_ptr.vmem [resolvable:$true] %s27
      %33 = dma.hbm_to_vmem [thread:$0]  %s26, 8192, %s28, [#allocation6], 512, 512, 32
    $region9: #{tpu_custom_call.1} parent=1 // pred_fallthru
      _
    // Predicated region
    $region10: #{tpu_custom_call.1} parent=1 // pred_check
      _
    $region11: #{tpu_custom_call.1} parent=1 // pred_check_branch
      %35 = sbr.rel (0) target = $region13
    $region12: #{tpu_custom_call.1} parent=1 // pred_region
      %37 = dma.done [#allocation3], 64
    $region13: #{tpu_custom_call.1} parent=1 // pred_fallthru
      _
    // Predicated region
    $region14: #{tpu_custom_call.1} parent=1 // pred_check
      _
    $region15: #{tpu_custom_call.1} parent=1 // pred_check_branch
      %39 = sbr.rel (0) target = $region17
    $region16: #{tpu_custom_call.1} parent=1 // pred_region
      %41 = dma.done [#allocation6], 8192
    $region17: #{tpu_custom_call.1} parent=1 // pred_fallthru
      _
    %v42 = vld [vmem:[#allocation2] sm:$0xf]
    %v43 = vld [vmem:[#allocation5] sm:$0xff]
    %v44 = vld [vmem:[#allocation5 + $0x8] sm:$0xff]
    %v45 = vld [vmem:[#allocation5 + $0x10] sm:$0xff]
    %v46 = vld [vmem:[#allocation5 + $0x18] sm:$0xff]
    %v47 = vld [vmem:[#allocation5 + $0x20] sm:$0xff]
    %v48 = vld [vmem:[#allocation5 + $0x28] sm:$0xff]
    %v49 = vld [vmem:[#allocation5 + $0x30] sm:$0xff]
    %v50 = vld [vmem:[#allocation5 + $0x38] sm:$0xff]
    %v51 = vld [vmem:[#allocation5 + $0x40] sm:$0xff]
    %v52 = vld [vmem:[#allocation5 + $0x48] sm:$0xff]
    %v53 = vld [vmem:[#allocation5 + $0x50] sm:$0xff]
    %v54 = vld [vmem:[#allocation5 + $0x58] sm:$0xff]
    %v55 = vld [vmem:[#allocation5 + $0x60] sm:$0xff]
    %v56 = vld [vmem:[#allocation5 + $0x68] sm:$0xff]
    %v57 = vld [vmem:[#allocation5 + $0x70] sm:$0xff]
    %v58 = vld [vmem:[#allocation5 + $0x78] sm:$0xff]
    %v59 = vld [vmem:[#allocation5 + $0x80] sm:$0xff]
    %v60 = vld [vmem:[#allocation5 + $0x88] sm:$0xff]
    %v61 = vld [vmem:[#allocation5 + $0x90] sm:$0xff]
    %v62 = vld [vmem:[#allocation5 + $0x98] sm:$0xff]
    %v63 = vld [vmem:[#allocation5 + $0xa0] sm:$0xff]
    %v64 = vld [vmem:[#allocation5 + $0xa8] sm:$0xff]
    %v65 = vld [vmem:[#allocation5 + $0xb0] sm:$0xff]
    %v66 = vld [vmem:[#allocation5 + $0xb8] sm:$0xff]
    %v67 = vld [vmem:[#allocation5 + $0xc0] sm:$0xff]
    %v68 = vld [vmem:[#allocation5 + $0xc8] sm:$0xff]
    %v69 = vld [vmem:[#allocation5 + $0xd0] sm:$0xff]
    %v70 = vld [vmem:[#allocation5 + $0xd8] sm:$0xff]
    %v71 = vld [vmem:[#allocation5 + $0xe0] sm:$0xff]
    %v72 = vld [vmem:[#allocation5 + $0xe8] sm:$0xff]
    %v73 = vld [vmem:[#allocation5 + $0xf0] sm:$0xff]
    %v74 = vld [vmem:[#allocation5 + $0xf8] sm:$0xff]
    %v75 = vld [vmem:[#allocation5 + $0x100] sm:$0xff]
    %v76 = vld [vmem:[#allocation5 + $0x108] sm:$0xff]
    %v77 = vld [vmem:[#allocation5 + $0x110] sm:$0xff]
    %v78 = vld [vmem:[#allocation5 + $0x118] sm:$0xff]
    %v79 = vld [vmem:[#allocation5 + $0x120] sm:$0xff]
    %v80 = vld [vmem:[#allocation5 + $0x128] sm:$0xff]
    %v81 = vld [vmem:[#allocation5 + $0x130] sm:$0xff]
    %v82 = vld [vmem:[#allocation5 + $0x138] sm:$0xff]
    %v83 = vld [vmem:[#allocation5 + $0x140] sm:$0xff]
    %v84 = vld [vmem:[#allocation5 + $0x148] sm:$0xff]
    %v85 = vld [vmem:[#allocation5 + $0x150] sm:$0xff]
    %v86 = vld [vmem:[#allocation5 + $0x158] sm:$0xff]
    %v87 = vld [vmem:[#allocation5 + $0x160] sm:$0xff]
    %v88 = vld [vmem:[#allocation5 + $0x168] sm:$0xff]
    %v89 = vld [vmem:[#allocation5 + $0x170] sm:$0xff]
    %v90 = vld [vmem:[#allocation5 + $0x178] sm:$0xff]
    %v91 = vld [vmem:[#allocation5 + $0x180] sm:$0xff]
    %v92 = vld [vmem:[#allocation5 + $0x188] sm:$0xff]
    %v93 = vld [vmem:[#allocation5 + $0x190] sm:$0xff]
    %v94 = vld [vmem:[#allocation5 + $0x198] sm:$0xff]
    %v95 = vld [vmem:[#allocation5 + $0x1a0] sm:$0xff]
    %v96 = vld [vmem:[#allocation5 + $0x1a8] sm:$0xff]
    %v97 = vld [vmem:[#allocation5 + $0x1b0] sm:$0xff]
    %v98 = vld [vmem:[#allocation5 + $0x1b8] sm:$0xff]
    %v99 = vld [vmem:[#allocation5 + $0x1c0] sm:$0xff]
    %v100 = vld [vmem:[#allocation5 + $0x1c8] sm:$0xff]
    %v101 = vld [vmem:[#allocation5 + $0x1d0] sm:$0xff]
    %v102 = vld [vmem:[#allocation5 + $0x1d8] sm:$0xff]
    %v103 = vld [vmem:[#allocation5 + $0x1e0] sm:$0xff]
    %v104 = vld [vmem:[#allocation5 + $0x1e8] sm:$0xff]
    %v105 = vld [vmem:[#allocation5 + $0x1f0] sm:$0xff]
    %v106 = vld [vmem:[#allocation5 + $0x1f8] sm:$0xff]
    %107 = vmatpush.msra.mxu0 %v103
    %108 = vmatpush.msra.mxu0 %v99
    %109 = vmatpush.msra.mxu0 %v95
    %110 = vmatpush.msra.mxu0 %v91
    %111 = vmatpush.msra.mxu0 %v87
    %112 = vmatpush.msra.mxu0 %v83
    %113 = vmatpush.msra.mxu0 %v79
    %114 = vmatpush.msra.mxu0 %v75
    %115 = vmatpush.msra.mxu0 %v71
    %116 = vmatpush.msra.mxu0 %v67
    %117 = vmatpush.msra.mxu0 %v63
    %118 = vmatpush.msra.mxu0 %v59
    %119 = vmatpush.msra.mxu0 %v55
    %120 = vmatpush.msra.mxu0 %v51
    %121 = vmatpush.msra.mxu0 %v47
    %122 = vmatpush.msra.mxu0 %v43
    %123 = vmatmul.f32.gmra.mxu0 %v42
    %v124 = vpop.f32.mrf.mxu0
    %v125 = vadd.f32 0.0, %v124
    %126 = vdwg.mxu0
    %127 = vmatpush.msra.mxu0 %v104
    %128 = vmatpush.msra.mxu0 %v100
    %129 = vmatpush.msra.mxu0 %v96
    %130 = vmatpush.msra.mxu0 %v92
    %131 = vmatpush.msra.mxu0 %v88
    %132 = vmatpush.msra.mxu0 %v84
    %133 = vmatpush.msra.mxu0 %v80
    %134 = vmatpush.msra.mxu0 %v76
    %135 = vmatpush.msra.mxu0 %v72
    %136 = vmatpush.msra.mxu0 %v68
    %137 = vmatpush.msra.mxu0 %v64
    %138 = vmatpush.msra.mxu0 %v60
    %139 = vmatpush.msra.mxu0 %v56
    %140 = vmatpush.msra.mxu0 %v52
    %141 = vmatpush.msra.mxu0 %v48
    %142 = vmatpush.msra.mxu0 %v44
    %143 = vmatmul.f32.gmra.mxu0 %v42
    %v144 = vpop.f32.mrf.mxu0
    %v145 = vadd.f32 0.0, %v144
    %146 = vdwg.mxu0
    %147 = vmatpush.msra.mxu0 %v105
    %148 = vmatpush.msra.mxu0 %v101
    %149 = vmatpush.msra.mxu0 %v97
    %150 = vmatpush.msra.mxu0 %v93
    %151 = vmatpush.msra.mxu0 %v89
    %152 = vmatpush.msra.mxu0 %v85
    %153 = vmatpush.msra.mxu0 %v81
    %154 = vmatpush.msra.mxu0 %v77
    %155 = vmatpush.msra.mxu0 %v73
    %156 = vmatpush.msra.mxu0 %v69
    %157 = vmatpush.msra.mxu0 %v65
    %158 = vmatpush.msra.mxu0 %v61
    %159 = vmatpush.msra.mxu0 %v57
    %160 = vmatpush.msra.mxu0 %v53
    %161 = vmatpush.msra.mxu0 %v49
    %162 = vmatpush.msra.mxu0 %v45
    %163 = vmatmul.f32.gmra.mxu0 %v42
    %v164 = vpop.f32.mrf.mxu0
    %v165 = vadd.f32 0.0, %v164
    %166 = vdwg.mxu0
    %167 = vmatpush.msra.mxu0 %v106
    %168 = vmatpush.msra.mxu0 %v102
    %169 = vmatpush.msra.mxu0 %v98
    %170 = vmatpush.msra.mxu0 %v94
    %171 = vmatpush.msra.mxu0 %v90
    %172 = vmatpush.msra.mxu0 %v86
    %173 = vmatpush.msra.mxu0 %v82
    %174 = vmatpush.msra.mxu0 %v78
    %175 = vmatpush.msra.mxu0 %v74
    %176 = vmatpush.msra.mxu0 %v70
    %177 = vmatpush.msra.mxu0 %v66
    %178 = vmatpush.msra.mxu0 %v62
    %179 = vmatpush.msra.mxu0 %v58
    %180 = vmatpush.msra.mxu0 %v54
    %181 = vmatpush.msra.mxu0 %v50
    %182 = vmatpush.msra.mxu0 %v46
    %183 = vmatmul.f32.gmra.mxu0 %v42
    %v184 = vpop.f32.mrf.mxu0
    %v185 = vadd.f32 0.0, %v184
    %186 = vdwg.mxu0
    %v191 = vrot.slane %v145, 4
    %v192 = vrot.slane %v185, 4
    %vm193 = vcmask 1043456
    %v194 = vsel %vm193, %v125, %v191
    %v195 = vsel %vm193, %v165, %v192
    %198 = vst [vmem:[#allocation7] sm:$0xff] %v194
    %199 = vst [vmem:[#allocation7 + $0x8] sm:$0xff] %v195
    // Predicated region
    $region18: #{tpu_custom_call.1} parent=1 // pred_check
      _
    $region19: #{tpu_custom_call.1} parent=1 // pred_check_branch
      %201 = sbr.rel (0) target = $region21
    $region20: #{tpu_custom_call.1} parent=1 // pred_region
      %203 = vsyncadd [#allocation4], 0
      %s205 = sshll.u32 [#allocation7], 4
      %s206 = int_to_ptr.vmem [resolvable:$true] %s205
      %s207 = sshll.u32 %s2, 4
      %s208 = int_to_ptr.hbm [resolvable:$true] %s207
      %210 = dma.vmem_to_hbm [thread:$0]  %s206, 256, %s208, [#allocation4]
    $region21: #{tpu_custom_call.1} parent=1 // pred_fallthru
      _
    // Predicated region
    $region22: #{tpu_custom_call.1} parent=1 // pred_check
      _
    $region23: #{tpu_custom_call.1} parent=1 // pred_check_branch
      %212 = sbr.rel (0) target = $region25
    $region24: #{tpu_custom_call.1} parent=1 // pred_region
      %214 = dma.done [#allocation4], 256
    $region25: #{tpu_custom_call.1} parent=1 // pred_fallthru
      _
    %215 = vsyncpa [#allocation3], 1
    %216 = vsyncpa [#allocation6], 1
    %217 = vsyncpa [#allocation4], 1

</llo_original>
